<compile_context>
chip_gen: v6e
topology: v6e:2x2x1
jax: 0.10.0
libtpu: 0.0.40
codegen_flags: <defaults>
</compile_context>

<pallas_src>
import functools

import jax
import jax.numpy as jnp
from jax.experimental import pallas as pl
from jax.experimental.pallas import tpu as pltpu

BN_EPS = 1e-5
LANE = 128  # lane width: output channels are padded to a multiple of this


# ----------------------------- Pallas kernel -------------------------------

def _matmul_bn_relu_kernel(p_ref, w_ref, g_ref, b_ref, o_ref, *, n_valid):
    """Fused (im2col-matmul -> BatchNorm(batch stats) -> ReLU) layer.

    p_ref : (Rp, Kp)   bf16 im2col patches (rows >= n_valid are zero padding)
    w_ref : (Kp, Cp)   bf16 weights, output channels zero-padded to Cp lanes
    g_ref : (1, Cp)    f32 BN gamma (zero-padded)
    b_ref : (1, Cp)    f32 BN beta  (zero-padded)
    o_ref : (Rp, Cp)   output (bf16 or f32), lane-dense unmasked stores
    """
    # Single MXU matmul per conv (bf16 operands, f32 accumulation).
    h = jnp.dot(p_ref[...], w_ref[...], preferred_element_type=jnp.float32)

    # One-pass batch statistics over the valid rows (padded rows are all-zero
    # and contribute nothing to the sums; we divide by the true count).
    inv_n = jnp.float32(1.0 / n_valid)
    s1 = jnp.sum(h, axis=0, keepdims=True)                 # (1, Cp)
    s2 = jnp.sum(h * h, axis=0, keepdims=True)             # (1, Cp)
    mean = s1 * inv_n
    var = jnp.maximum(s2 * inv_n - mean * mean, 0.0)       # biased variance

    # Fold gamma*rsqrt(var+eps) and the bias into one multiply-add, then ReLU.
    scale = g_ref[...] * jax.lax.rsqrt(var + BN_EPS)
    shift = b_ref[...] - mean * scale
    o_ref[...] = jnp.maximum(h * scale + shift, 0.0).astype(o_ref.dtype)


def _round_up(x, m):
    return -(-x // m) * m


def _conv_bn_relu_pallas(patches, w_flat, gamma, beta, out_dtype):
    """patches: (R, K); w_flat: (K, Co) -> (R, Co) after conv + BN + ReLU."""
    R, K = patches.shape
    Co = w_flat.shape[1]
    Rp = _round_up(R, 8)
    Kp = _round_up(K, 8)
    Cp = _round_up(Co, LANE)                               # lane-dense channels

    p = jnp.pad(patches, ((0, Rp - R), (0, Kp - K))).astype(jnp.bfloat16)
    w = jnp.pad(w_flat, ((0, Kp - K), (0, Cp - Co))).astype(jnp.bfloat16)
    g = jnp.pad(gamma.reshape(1, -1).astype(jnp.float32), ((0, 0), (0, Cp - Co)))
    b = jnp.pad(beta.reshape(1, -1).astype(jnp.float32), ((0, 0), (0, Cp - Co)))

    out = pl.pallas_call(
        functools.partial(_matmul_bn_relu_kernel, n_valid=R),
        out_shape=jax.ShapeDtypeStruct((Rp, Cp), out_dtype),
        grid=(1,),
        in_specs=[
            pl.BlockSpec((Rp, Kp), lambda i: (0, 0)),
            pl.BlockSpec((Kp, Cp), lambda i: (0, 0)),
            pl.BlockSpec((1, Cp), lambda i: (0, 0)),
            pl.BlockSpec((1, Cp), lambda i: (0, 0)),
        ],
        out_specs=pl.BlockSpec((Rp, Cp), lambda i: (0, 0)),
        compiler_params=pltpu.CompilerParams(
            dimension_semantics=("arbitrary",),
            vmem_limit_bytes=32 * 1024 * 1024),
    )(p, w, g, b)
    return out[:R, :Co]


# ------------------------------ JAX glue ------------------------------------

def _im2col_3x3(x_nhwc):
    """(N, H, W, C) -> (N*H*W, 9*C) patches for a SAME (pad=1) 3x3 conv."""
    N, H, W, C = x_nhwc.shape
    xp = jnp.pad(x_nhwc, ((0, 0), (1, 1), (1, 1), (0, 0)))
    taps = [xp[:, dy:dy + H, dx:dx + W, :]
            for dy in range(3) for dx in range(3)]
    return jnp.concatenate(taps, axis=-1).reshape(N * H * W, 9 * C)


def double_conv_pallas(x_nhwc, w1, g1, b1, w2, g2, b2):
    N, H, W, Cin = x_nhwc.shape
    Cmid = w1.shape[-1]
    Cout = w2.shape[-1]
    # TODO(synk): for real UNet feature-map sizes, spatially tile the matmul
    # with a two-pass BatchNorm (per-tile sum/sumsq accumulation, then a
    # normalize pass); a single-block call is used here because BatchNorm
    # needs global (N,H,W) statistics and this problem fits easily in VMEM.
    p1 = _im2col_3x3(x_nhwc)
    h1 = _conv_bn_relu_pallas(p1, w1.reshape(9 * Cin, Cmid), g1, b1,
                              jnp.bfloat16)
    p2 = _im2col_3x3(h1.reshape(N, H, W, Cmid))
    y = _conv_bn_relu_pallas(p2, w2.reshape(9 * Cmid, Cout), g2, b2,
                             jnp.float32)
    return y.reshape(N, H, W, Cout)


def upsample_bilinear_x2_align_corners(x):
    """x: (N,C,H,W) -> (N,C,2H,2W), mode='bilinear', align_corners=True."""
    N, C, H, W = x.shape
    Ho, Wo = 2 * H, 2 * W

    def src_coords(out_size, in_size):
        if in_size == 1:
            return jnp.zeros((out_size,), jnp.float32)
        return jnp.arange(out_size, dtype=jnp.float32) * (
            (in_size - 1) / (out_size - 1))

    ys = src_coords(Ho, H)
    xs = src_coords(Wo, W)
    y0 = jnp.floor(ys).astype(jnp.int32)
    y1 = jnp.minimum(y0 + 1, H - 1)
    wy = ys - y0.astype(jnp.float32)
    x0 = jnp.floor(xs).astype(jnp.int32)
    x1 = jnp.minimum(x0 + 1, W - 1)
    wx = xs - x0.astype(jnp.float32)

    r0 = jnp.take(x, y0, axis=2)
    r1 = jnp.take(x, y1, axis=2)
    rows = r0 * (1.0 - wy)[None, None, :, None] + r1 * wy[None, None, :, None]
    c0 = jnp.take(rows, x0, axis=3)
    c1 = jnp.take(rows, x1, axis=3)
    return c0 * (1.0 - wx)[None, None, None, :] + c1 * wx[None, None, None, :]


def up_forward(x1, x2, params):
    """Up.forward: x1, x2 in NCHW; returns NCHW (like the PyTorch module)."""
    w1, g1, b1, w2, g2, b2 = params
    x1u = upsample_bilinear_x2_align_corners(x1)
    diffY = x2.shape[2] - x1u.shape[2]
    diffX = x2.shape[3] - x1u.shape[3]
    x1p = jnp.pad(x1u, ((0, 0), (0, 0),
                        (diffY // 2, diffY - diffY // 2),
                        (diffX // 2, diffX - diffX // 2)))
    x = jnp.concatenate([x2, x1p], axis=1)                 # NCHW, C = in_channels
    # NCHW <-> NHWC transposes are kept only to preserve the PyTorch boundary;
    # a fully-NHWC network would drop them.
    x_nhwc = jnp.transpose(x, (0, 2, 3, 1))
    y_nhwc = double_conv_pallas(x_nhwc, w1, g1, b1, w2, g2, b2)
    return jnp.transpose(y_nhwc, (0, 3, 1, 2))


# --------------------------- pure-JAX reference ------------------------------

def _ref_double_conv(x_nhwc, w1, g1, b1, w2, g2, b2):
    # Matches the kernel's numerics: bf16 MXU operands, f32 accumulation,
    # f32 BN/ReLU, bf16 intermediate activation.
    def conv(x, w):
        return jax.lax.conv_general_dilated(
            x.astype(jnp.bfloat16), w.astype(jnp.bfloat16),
            window_strides=(1, 1), padding="SAME",
            dimension_numbers=("NHWC", "HWIO", "NHWC"),
            preferred_element_type=jnp.float32)

    def bn_relu(h, g, b):
        mean = jnp.mean(h, axis=(0, 1, 2), keepdims=True)
        var = jnp.mean((h - mean) ** 2, axis=(0, 1, 2), keepdims=True)
        y = (h - mean) * jax.lax.rsqrt(var + BN_EPS)
        y = y * g.reshape(1, 1, 1, -1) + b.reshape(1, 1, 1, -1)
        return jnp.maximum(y, 0.0)

    h = bn_relu(conv(x_nhwc, w1), g1, b1).astype(jnp.bfloat16)
    return bn_relu(conv(h, w2), g2, b2)


def ref_up_forward(x1, x2, params):
    w1, g1, b1, w2, g2, b2 = params
    x1u = upsample_bilinear_x2_align_corners(x1)
    diffY = x2.shape[2] - x1u.shape[2]
    diffX = x2.shape[3] - x1u.shape[3]
    x1p = jnp.pad(x1u, ((0, 0), (0, 0),
                        (diffY // 2, diffY - diffY // 2),
                        (diffX // 2, diffX - diffX // 2)))
    x = jnp.concatenate([x2, x1p], axis=1)
    x_nhwc = jnp.transpose(x, (0, 2, 3, 1))
    y = _ref_double_conv(x_nhwc, w1, g1, b1, w2, g2, b2)
    return jnp.transpose(y, (0, 3, 1, 2))


# --------------------------------- main --------------------------------------

if __name__ == "__main__":
    # Up(in_channels=8, out_channels=4, bilinear=True):
    #   mid_channels = in_channels // 2 = 4
    in_channels, out_channels = 8, 4
    mid_channels = in_channels // 2

    key = jax.random.PRNGKey(0)
    k1, k2, k3, k4, k5, k6, k7, k8 = jax.random.split(key, 8)

    # x1: coarse feature map (to be upsampled); x2: skip connection.
    x1 = jax.random.normal(k1, (2, in_channels // 2, 8, 8), jnp.float32)
    x2 = jax.random.normal(k2, (2, in_channels // 2, 16, 16), jnp.float32)

    # Deterministic synthetic parameters (conv weights in HWIO layout).
    w1 = 0.2 * jax.random.normal(k3, (3, 3, in_channels, mid_channels), jnp.float32)
    w2 = 0.2 * jax.random.normal(k4, (3, 3, mid_channels, out_channels), jnp.float32)
    g1 = 1.0 + 0.1 * jax.random.normal(k5, (1, mid_channels), jnp.float32)
    b1 = 0.1 * jax.random.normal(k6, (1, mid_channels), jnp.float32)
    g2 = 1.0 + 0.1 * jax.random.normal(k7, (1, out_channels), jnp.float32)
    b2 = 0.1 * jax.random.normal(k8, (1, out_channels), jnp.float32)
    params = (w1, g1, b1, w2, g2, b2)

    out = jax.block_until_ready(up_forward(x1, x2, params))
    ref = jax.block_until_ready(ref_up_forward(x1, x2, params))

    assert out.shape == (2, out_channels, 16, 16), out.shape
    assert bool(jnp.all(jnp.isfinite(out)))
    max_err = float(jnp.max(jnp.abs(out - ref)))
    assert bool(jnp.allclose(out, ref, rtol=2e-2, atol=2e-2)), max_err

    print("KERNEL_OK")
</pallas_src>

<mosaic_0001>
module attributes {stable_mosaic.version = 11 : i64} {
  func.func @_matmul_bn_relu_kernel(%arg0: i32, %arg1: memref<512x72xbf16, #tpu.memory_space<vmem>>, %arg2: memref<72x128xbf16, #tpu.memory_space<vmem>>, %arg3: memref<1x128xf32, #tpu.memory_space<vmem>>, %arg4: memref<1x128xf32, #tpu.memory_space<vmem>>, %arg5: memref<512x128xbf16, #tpu.memory_space<vmem>>) attributes {dimension_semantics = [#tpu.dimension_semantics<arbitrary>], iteration_bounds = array<i64: 1>, scalar_prefetch = 0 : i64, scratch_operands = 0 : i64, tpu.core_type = #tpu.core_type<tc>, window_params = [{pipeline_mode = #tpu.pipeline_mode<synchronous>, transform_indices = @transform_0, window_bounds = array<i64: 512, 72>}, {pipeline_mode = #tpu.pipeline_mode<synchronous>, transform_indices = @transform_1, window_bounds = array<i64: 72, 128>}, {pipeline_mode = #tpu.pipeline_mode<synchronous>, transform_indices = @transform_2, window_bounds = array<i64: 1, 128>}, {pipeline_mode = #tpu.pipeline_mode<synchronous>, transform_indices = @transform_3, window_bounds = array<i64: 1, 128>}, {pipeline_mode = #tpu.pipeline_mode<synchronous>, transform_indices = @transform_4, window_bounds = array<i64: 512, 128>}]} {
    %c0 = arith.constant 0 : index
    %c0_0 = arith.constant 0 : index
    %0 = vector.load %arg1[%c0, %c0_0] : memref<512x72xbf16, #tpu.memory_space<vmem>>, vector<512x72xbf16>
    %c0_1 = arith.constant 0 : index
    %c0_2 = arith.constant 0 : index
    %1 = vector.load %arg2[%c0_1, %c0_2] : memref<72x128xbf16, #tpu.memory_space<vmem>>, vector<72x128xbf16>
    %cst = arith.constant dense<0.000000e+00> : vector<512x128xf32>
    %2 = tpu.matmul %0, %1, %cst {dimension_numbers = #tpu.dot_dimension_numbers<[1], [0], [0], [1], [0, 0, 1, 1], [], []>} : vector<512x72xbf16>, vector<72x128xbf16>, vector<512x128xf32> -> vector<512x128xf32>
    %cst_3 = arith.constant dense<0.000000e+00> : vector<128xf32>
    %3 = vector.multi_reduction <add>, %2, %cst_3 [0] : vector<512x128xf32> to vector<128xf32>
    %4 = vector.shape_cast %3 : vector<128xf32> to vector<1x128xf32>
    %5 = arith.mulf %2, %2 : vector<512x128xf32>
    %cst_4 = arith.constant dense<0.000000e+00> : vector<128xf32>
    %6 = vector.multi_reduction <add>, %5, %cst_4 [0] : vector<512x128xf32> to vector<128xf32>
    %7 = vector.shape_cast %6 : vector<128xf32> to vector<1x128xf32>
    %cst_5 = arith.constant 0.001953125 : f32
    %8 = vector.broadcast %cst_5 : f32 to vector<1x128xf32>
    %9 = arith.mulf %4, %8 : vector<1x128xf32>
    %cst_6 = arith.constant 0.001953125 : f32
    %10 = vector.broadcast %cst_6 : f32 to vector<1x128xf32>
    %11 = arith.mulf %7, %10 : vector<1x128xf32>
    %12 = arith.mulf %9, %9 : vector<1x128xf32>
    %13 = arith.subf %11, %12 : vector<1x128xf32>
    %cst_7 = arith.constant 0.000000e+00 : f32
    %14 = vector.broadcast %cst_7 : f32 to vector<1x128xf32>
    %15 = arith.maximumf %13, %14 : vector<1x128xf32>
    %c0_8 = arith.constant 0 : index
    %c0_9 = arith.constant 0 : index
    %16 = vector.load %arg3[%c0_8, %c0_9] : memref<1x128xf32, #tpu.memory_space<vmem>>, vector<1x128xf32>
    %cst_10 = arith.constant 9.99999974E-6 : f32
    %17 = vector.broadcast %cst_10 : f32 to vector<1x128xf32>
    %18 = arith.addf %15, %17 : vector<1x128xf32>
    %19 = math.rsqrt %18 : vector<1x128xf32>
    %20 = arith.mulf %16, %19 : vector<1x128xf32>
    %c0_11 = arith.constant 0 : index
    %c0_12 = arith.constant 0 : index
    %21 = vector.load %arg4[%c0_11, %c0_12] : memref<1x128xf32, #tpu.memory_space<vmem>>, vector<1x128xf32>
    %22 = arith.mulf %9, %20 : vector<1x128xf32>
    %23 = arith.subf %21, %22 : vector<1x128xf32>
    %24 = vector.broadcast %20 : vector<1x128xf32> to vector<512x128xf32>
    %25 = arith.mulf %2, %24 : vector<512x128xf32>
    %26 = vector.broadcast %23 : vector<1x128xf32> to vector<512x128xf32>
    %27 = arith.addf %25, %26 : vector<512x128xf32>
    %cst_13 = arith.constant 0.000000e+00 : f32
    %28 = vector.broadcast %cst_13 : f32 to vector<512x128xf32>
    %29 = arith.maximumf %27, %28 : vector<512x128xf32>
    %30 = arith.truncf %29 : vector<512x128xf32> to vector<512x128xbf16>
    %c0_14 = arith.constant 0 : index
    %c0_15 = arith.constant 0 : index
    %31 = vector.load %arg5[%c0_14, %c0_15] : memref<512x128xbf16, #tpu.memory_space<vmem>>, vector<512x128xbf16>
    tpu.vector_store %arg5[%c0_14, %c0_15], %30 {strides = array<i32>} : memref<512x128xbf16, #tpu.memory_space<vmem>>, vector<512x128xbf16>,
    return
  }
  func.func @transform_0(%arg0: i32) -> (i32, i32) {
    %c0_i32 = arith.constant 0 : i32
    %c0_i32_0 = arith.constant 0 : i32
    %c0_i32_1 = arith.constant 0 : i32
    return %c0_i32, %c0_i32_0 : i32, i32
  }
  func.func @transform_1(%arg0: i32) -> (i32, i32) {
    %c0_i32 = arith.constant 0 : i32
    %c0_i32_0 = arith.constant 0 : i32
    %c0_i32_1 = arith.constant 0 : i32
    return %c0_i32, %c0_i32_0 : i32, i32
  }
  func.func @transform_2(%arg0: i32) -> (i32, i32) {
    %c0_i32 = arith.constant 0 : i32
    %c0_i32_0 = arith.constant 0 : i32
    %c0_i32_1 = arith.constant 0 : i32
    return %c0_i32, %c0_i32_0 : i32, i32
  }
  func.func @transform_3(%arg0: i32) -> (i32, i32) {
    %c0_i32 = arith.constant 0 : i32
    %c0_i32_0 = arith.constant 0 : i32
    %c0_i32_1 = arith.constant 0 : i32
    return %c0_i32, %c0_i32_0 : i32, i32
  }
  func.func @transform_4(%arg0: i32) -> (i32, i32) {
    %c0_i32 = arith.constant 0 : i32
    %c0_i32_0 = arith.constant 0 : i32
    %c0_i32_1 = arith.constant 0 : i32
    return %c0_i32, %c0_i32_0 : i32, i32
  }
}

</mosaic_0001>

<llo_original>
// kernel: tpu_custom_call.1
$region0: #{tpu_custom_call.1}
  #allocation0 [shape = 'u32[]', space=smem, size = 0x4, offset = 0x4, fixed_abs, tag = 'smem constant byte address 0x4 - core index']
  #allocation1 [shape = 'u32[144,128]{1,0:T(1,128)}', space=vmem, size = 0x12000, scoped, tag = 'internal scratch']
  %s0 = inlined_call_operand.vmem [shape: bf16[512,72], index: 0, kind: input, shape index: {}]
  %s1 = inlined_call_operand.vmem [shape: bf16[72,128], index: 1, kind: input, shape index: {}]
  %s2 = inlined_call_operand.vmem [shape: f32[1,128], index: 2, kind: input, shape index: {}]
  %s3 = inlined_call_operand.vmem [shape: f32[1,128], index: 3, kind: input, shape index: {}]
  %s4 = inlined_call_operand.hbm [shape: bf16[512,128], index: 4, kind: output, shape index: {}]
  %s5 = sld [smem:[#allocation0]]
  $region26: #{tpu_custom_call.1} parent=0
    _
  %s7 = ssub.s32 1, %s5
  %s8 = scalar_select 0, %s7, %s5
  $region1: #{tpu_custom_call.1} parent=0
    #allocation2 [shape = 'u8[131072]{0}', space=vmem, size = 0x20000, scoped, tag = 'output window, operand 0, single buffered']
    #allocation3 [shape = 's32[1]{0}', space=sflag, size = 0x4, scoped, tag = 'scoped memory for tpu_custom_call.1']
    %9 = vsyncpa [#allocation3], 0
    // Predicated region
    $region2: #{tpu_custom_call.1} parent=1 // pred_check
      _
    $region3: #{tpu_custom_call.1} parent=1 // pred_check_branch
      %11 = sbr.rel (0) target = $region5
    $region4: #{tpu_custom_call.1} parent=1 // pred_region
      _
    $region5: #{tpu_custom_call.1} parent=1 // pred_fallthru
      _
    // Predicated region
    $region6: #{tpu_custom_call.1} parent=1 // pred_check
      _
    $region7: #{tpu_custom_call.1} parent=1 // pred_check_branch
      %13 = sbr.rel (0) target = $region9
    $region8: #{tpu_custom_call.1} parent=1 // pred_region
      _
    $region9: #{tpu_custom_call.1} parent=1 // pred_fallthru
      _
    // Predicated region
    $region10: #{tpu_custom_call.1} parent=1 // pred_check
      _
    $region11: #{tpu_custom_call.1} parent=1 // pred_check_branch
      %15 = sbr.rel (0) target = $region13
    $region12: #{tpu_custom_call.1} parent=1 // pred_region
      _
    $region13: #{tpu_custom_call.1} parent=1 // pred_fallthru
      _
    // Predicated region
    $region14: #{tpu_custom_call.1} parent=1 // pred_check
      _
    $region15: #{tpu_custom_call.1} parent=1 // pred_check_branch
      %17 = sbr.rel (0) target = $region17
    $region16: #{tpu_custom_call.1} parent=1 // pred_region
      _
    $region17: #{tpu_custom_call.1} parent=1 // pred_fallthru
      _
    %v19 = vld [vmem:[%s0] sm:$0xf]
    %v20 = vld [vmem:[%s0 + $0x4] sm:$0xf]
    %v21 = vld [vmem:[%s0 + $0x8] sm:$0xf]
    %v22 = vld [vmem:[%s0 + $0xc] sm:$0xf]
    %v23 = vld [vmem:[%s0 + $0x10] sm:$0xf]
    %v24 = vld [vmem:[%s0 + $0x14] sm:$0xf]
    %v25 = vld [vmem:[%s0 + $0x18] sm:$0xf]
    %v26 = vld [vmem:[%s0 + $0x1c] sm:$0xf]
    %v27 = vld [vmem:[%s0 + $0x20] sm:$0xf]
    %v28 = vld [vmem:[%s0 + $0x24] sm:$0xf]
    %v29 = vld [vmem:[%s0 + $0x28] sm:$0xf]
    %v30 = vld [vmem:[%s0 + $0x2c] sm:$0xf]
    %v31 = vld [vmem:[%s0 + $0x30] sm:$0xf]
    %v32 = vld [vmem:[%s0 + $0x34] sm:$0xf]
    %v33 = vld [vmem:[%s0 + $0x38] sm:$0xf]
    %v34 = vld [vmem:[%s0 + $0x3c] sm:$0xf]
    %v35 = vld [vmem:[%s0 + $0x40] sm:$0xf]
    %v36 = vld [vmem:[%s0 + $0x44] sm:$0xf]
    %v37 = vld [vmem:[%s0 + $0x48] sm:$0xf]
    %v38 = vld [vmem:[%s0 + $0x4c] sm:$0xf]
    %v39 = vld [vmem:[%s0 + $0x50] sm:$0xf]
    %v40 = vld [vmem:[%s0 + $0x54] sm:$0xf]
    %v41 = vld [vmem:[%s0 + $0x58] sm:$0xf]
    %v42 = vld [vmem:[%s0 + $0x5c] sm:$0xf]
    %v43 = vld [vmem:[%s0 + $0x60] sm:$0xf]
    %v44 = vld [vmem:[%s0 + $0x64] sm:$0xf]
    %v45 = vld [vmem:[%s0 + $0x68] sm:$0xf]
    %v46 = vld [vmem:[%s0 + $0x6c] sm:$0xf]
    %v47 = vld [vmem:[%s0 + $0x70] sm:$0xf]
    %v48 = vld [vmem:[%s0 + $0x74] sm:$0xf]
    %v49 = vld [vmem:[%s0 + $0x78] sm:$0xf]
    %v50 = vld [vmem:[%s0 + $0x7c] sm:$0xf]
    %v51 = vld [vmem:[%s0 + $0x80] sm:$0xf]
    %v52 = vld [vmem:[%s0 + $0x84] sm:$0xf]
    %v53 = vld [vmem:[%s0 + $0x88] sm:$0xf]
    %v54 = vld [vmem:[%s0 + $0x8c] sm:$0xf]
    %v55 = vld [vmem:[%s0 + $0x90] sm:$0xf]
    %v56 = vld [vmem:[%s0 + $0x94] sm:$0xf]
    %v57 = vld [vmem:[%s0 + $0x98] sm:$0xf]
    %v58 = vld [vmem:[%s0 + $0x9c] sm:$0xf]
    %v59 = vld [vmem:[%s0 + $0xa0] sm:$0xf]
    %v60 = vld [vmem:[%s0 + $0xa4] sm:$0xf]
    %v61 = vld [vmem:[%s0 + $0xa8] sm:$0xf]
    %v62 = vld [vmem:[%s0 + $0xac] sm:$0xf]
    %v63 = vld [vmem:[%s0 + $0xb0] sm:$0xf]
    %v64 = vld [vmem:[%s0 + $0xb4] sm:$0xf]
    %v65 = vld [vmem:[%s0 + $0xb8] sm:$0xf]
    %v66 = vld [vmem:[%s0 + $0xbc] sm:$0xf]
    %v67 = vld [vmem:[%s0 + $0xc0] sm:$0xf]
    %v68 = vld [vmem:[%s0 + $0xc4] sm:$0xf]
    %v69 = vld [vmem:[%s0 + $0xc8] sm:$0xf]
    %v70 = vld [vmem:[%s0 + $0xcc] sm:$0xf]
    %v71 = vld [vmem:[%s0 + $0xd0] sm:$0xf]
    %v72 = vld [vmem:[%s0 + $0xd4] sm:$0xf]
    %v73 = vld [vmem:[%s0 + $0xd8] sm:$0xf]
    %v74 = vld [vmem:[%s0 + $0xdc] sm:$0xf]
    %v75 = vld [vmem:[%s0 + $0xe0] sm:$0xf]
    %v76 = vld [vmem:[%s0 + $0xe4] sm:$0xf]
    %v77 = vld [vmem:[%s0 + $0xe8] sm:$0xf]
    %v78 = vld [vmem:[%s0 + $0xec] sm:$0xf]
    %v79 = vld [vmem:[%s0 + $0xf0] sm:$0xf]
    %v80 = vld [vmem:[%s0 + $0xf4] sm:$0xf]
    %v81 = vld [vmem:[%s0 + $0xf8] sm:$0xf]
    %v82 = vld [vmem:[%s0 + $0xfc] sm:$0xf]
    %v83 = vld [vmem:[%s1] sm:$0xf]
    %v84 = vld [vmem:[%s1 + $0x4] sm:$0xf]
    %v85 = vld [vmem:[%s1 + $0x8] sm:$0xf]
    %v86 = vld [vmem:[%s1 + $0xc] sm:$0xf]
    %v87 = vld [vmem:[%s1 + $0x10] sm:$0xf]
    %v88 = vld [vmem:[%s1 + $0x14] sm:$0xf]
    %v89 = vld [vmem:[%s1 + $0x18] sm:$0xf]
    %v90 = vld [vmem:[%s1 + $0x1c] sm:$0xf]
    %v91 = vld [vmem:[%s1 + $0x20] sm:$0xf]
    %v156 = vunpack.c.l.b16 %v19
    %v157 = vunpack.c.l.b16 %v20
    %v158 = vunpack.c.l.b16 %v21
    %v159 = vunpack.c.l.b16 %v22
    %v160 = vunpack.c.l.b16 %v23
    %v161 = vunpack.c.l.b16 %v24
    %v162 = vunpack.c.l.b16 %v25
    %v163 = vunpack.c.l.b16 %v26
    %v164 = vunpack.c.l.b16 %v27
    %v165 = vunpack.c.l.b16 %v28
    %v166 = vunpack.c.l.b16 %v29
    %v167 = vunpack.c.l.b16 %v30
    %v168 = vunpack.c.l.b16 %v31
    %v169 = vunpack.c.l.b16 %v32
    %v170 = vunpack.c.l.b16 %v33
    %v171 = vunpack.c.l.b16 %v34
    %v172 = vunpack.c.l.b16 %v35
    %v173 = vunpack.c.l.b16 %v36
    %v174 = vunpack.c.l.b16 %v37
    %v175 = vunpack.c.l.b16 %v38
    %v176 = vunpack.c.l.b16 %v39
    %v177 = vunpack.c.l.b16 %v40
    %v178 = vunpack.c.l.b16 %v41
    %v179 = vunpack.c.l.b16 %v42
    %v180 = vunpack.c.l.b16 %v43
    %v181 = vunpack.c.l.b16 %v44
    %v182 = vunpack.c.l.b16 %v45
    %v183 = vunpack.c.l.b16 %v46
    %v184 = vunpack.c.l.b16 %v47
    %v185 = vunpack.c.l.b16 %v48
    %v186 = vunpack.c.l.b16 %v49
    %v187 = vunpack.c.l.b16 %v50
    %v188 = vunpack.c.l.b16 %v51
    %v189 = vunpack.c.l.b16 %v52
    %v190 = vunpack.c.l.b16 %v53
    %v191 = vunpack.c.l.b16 %v54
    %v192 = vunpack.c.l.b16 %v55
    %v193 = vunpack.c.l.b16 %v56
    %v194 = vunpack.c.l.b16 %v57
    %v195 = vunpack.c.l.b16 %v58
    %v196 = vunpack.c.l.b16 %v59
    %v197 = vunpack.c.l.b16 %v60
    %v198 = vunpack.c.l.b16 %v61
    %v199 = vunpack.c.l.b16 %v62
    %v200 = vunpack.c.l.b16 %v63
    %v201 = vunpack.c.l.b16 %v64
    %v202 = vunpack.c.l.b16 %v65
    %v203 = vunpack.c.l.b16 %v66
    %v204 = vunpack.c.l.b16 %v67
    %v205 = vunpack.c.l.b16 %v68
    %v206 = vunpack.c.l.b16 %v69
    %v207 = vunpack.c.l.b16 %v70
    %v208 = vunpack.c.l.b16 %v71
    %v209 = vunpack.c.l.b16 %v72
    %v210 = vunpack.c.l.b16 %v73
    %v211 = vunpack.c.l.b16 %v74
    %v212 = vunpack.c.l.b16 %v75
    %v213 = vunpack.c.l.b16 %v76
    %v214 = vunpack.c.l.b16 %v77
    %v215 = vunpack.c.l.b16 %v78
    %v216 = vunpack.c.l.b16 %v79
    %v217 = vunpack.c.l.b16 %v80
    %v218 = vunpack.c.l.b16 %v81
    %v219 = vunpack.c.l.b16 %v82
    %v220 = vpack.c.b16 %v157, %v156
    %v221 = vpack.c.b16 %v159, %v158
    %v222 = vpack.c.b16 %v161, %v160
    %v223 = vpack.c.b16 %v163, %v162
    %v224 = vpack.c.b16 %v165, %v164
    %v225 = vpack.c.b16 %v167, %v166
    %v226 = vpack.c.b16 %v169, %v168
    %v227 = vpack.c.b16 %v171, %v170
    %v228 = vpack.c.b16 %v173, %v172
    %v229 = vpack.c.b16 %v175, %v174
    %v230 = vpack.c.b16 %v177, %v176
    %v231 = vpack.c.b16 %v179, %v178
    %v232 = vpack.c.b16 %v181, %v180
    %v233 = vpack.c.b16 %v183, %v182
    %v234 = vpack.c.b16 %v185, %v184
    %v235 = vpack.c.b16 %v187, %v186
    %v236 = vpack.c.b16 %v189, %v188
    %v237 = vpack.c.b16 %v191, %v190
    %v238 = vpack.c.b16 %v193, %v192
    %v239 = vpack.c.b16 %v195, %v194
    %v240 = vpack.c.b16 %v197, %v196
    %v241 = vpack.c.b16 %v199, %v198
    %v242 = vpack.c.b16 %v201, %v200
    %v243 = vpack.c.b16 %v203, %v202
    %v244 = vpack.c.b16 %v205, %v204
    %v245 = vpack.c.b16 %v207, %v206
    %v246 = vpack.c.b16 %v209, %v208
    %v247 = vpack.c.b16 %v211, %v210
    %v248 = vpack.c.b16 %v213, %v212
    %v249 = vpack.c.b16 %v215, %v214
    %v250 = vpack.c.b16 %v217, %v216
    %v251 = vpack.c.b16 %v219, %v218
    %v261 = vunpack.c.l.b16 %v83
    %v262 = vunpack.c.l.b16 %v84
    %v263 = vunpack.c.l.b16 %v85
    %v264 = vunpack.c.l.b16 %v86
    %v265 = vunpack.c.l.b16 %v87
    %v266 = vunpack.c.l.b16 %v88
    %v267 = vunpack.c.l.b16 %v89
    %v268 = vunpack.c.l.b16 %v90
    %v269 = vunpack.c.l.b16 %v91
    %v270 = vpack.c.b16 %v262, %v261
    %v271 = vpack.c.b16 %v264, %v263
    %v272 = vpack.c.b16 %v266, %v265
    %v273 = vpack.c.b16 %v268, %v267
    %v274 = vpack.c.b16 %v269, %v269
    %vm279 = vcmask 588800
    %v281 = vsel %vm279, %v220, 0
    %v284 = vsel %vm279, %v221, 0
    %v287 = vsel %vm279, %v222, 0
    %v290 = vsel %vm279, %v223, 0
    %v293 = vsel %vm279, %v224, 0
    %v296 = vsel %vm279, %v225, 0
    %v299 = vsel %vm279, %v226, 0
    %v302 = vsel %vm279, %v227, 0
    %v305 = vsel %vm279, %v228, 0
    %v308 = vsel %vm279, %v229, 0
    %v311 = vsel %vm279, %v230, 0
    %v314 = vsel %vm279, %v231, 0
    %v317 = vsel %vm279, %v232, 0
    %v320 = vsel %vm279, %v233, 0
    %v323 = vsel %vm279, %v234, 0
    %v326 = vsel %vm279, %v235, 0
    %v329 = vsel %vm279, %v236, 0
    %v332 = vsel %vm279, %v237, 0
    %v335 = vsel %vm279, %v238, 0
    %v338 = vsel %vm279, %v239, 0
    %v341 = vsel %vm279, %v240, 0
    %v344 = vsel %vm279, %v241, 0
    %v347 = vsel %vm279, %v242, 0
    %v350 = vsel %vm279, %v243, 0
    %v353 = vsel %vm279, %v244, 0
    %v356 = vsel %vm279, %v245, 0
    %v359 = vsel %vm279, %v246, 0
    %v362 = vsel %vm279, %v247, 0
    %v365 = vsel %vm279, %v248, 0
    %v368 = vsel %vm279, %v249, 0
    %v371 = vsel %vm279, %v250, 0
    %v374 = vsel %vm279, %v251, 0
    %vm376 = vcmask 1043456
    %v378 = vsel %vm376, %v274, 0
    %380 = vmatprep.subr.bf16.mxu0 0
    %381 = vmatpush1.bf16.msra.mxu0 0
    %382 = vmatprep.subr.bf16.mxu0 0
    %383 = vmatpush1.bf16.msra.mxu0 0
    %384 = vmatprep.subr.bf16.mxu0 0
    %385 = vmatpush1.bf16.msra.mxu0 0
    %386 = vmatprep.subr.bf16.mxu0 0
    %387 = vmatpush1.bf16.msra.mxu0 %v378
    %388 = vmatprep.subr.bf16.mxu0 0
    %389 = vmatpush1.bf16.msra.mxu0 %v273
    %390 = vmatprep.subr.bf16.mxu0 0
    %391 = vmatpush1.bf16.msra.mxu0 %v272
    %392 = vmatprep.subr.bf16.mxu0 0
    %393 = vmatpush1.bf16.msra.mxu0 %v271
    %394 = vmatprep.subr.bf16.mxu0 0
    %395 = vmatpush1.bf16.msra.mxu0 %v270
    %396 = vmatprep.subr.bf16.mxu0 0
    %397 = vmatpush2.bf16.msra.mxu0 0
    %398 = vmatprep.subr.bf16.mxu0 0
    %399 = vmatpush2.bf16.msra.mxu0 0
    %400 = vmatprep.subr.bf16.mxu0 0
    %401 = vmatpush2.bf16.msra.mxu0 0
    %402 = vmatprep.subr.bf16.mxu0 0
    %403 = vmatpush2.bf16.msra.mxu0 0
    %404 = vmatprep.subr.bf16.mxu0 0
    %405 = vmatpush2.bf16.msra.mxu0 0
    %406 = vmatprep.subr.bf16.mxu0 0
    %407 = vmatpush2.bf16.msra.mxu0 0
    %408 = vmatprep.subr.bf16.mxu0 0
    %409 = vmatpush2.bf16.msra.mxu0 0
    %410 = vmatprep.subr.bf16.mxu0 0
    %411 = vmatpush2.bf16.msra.mxu0 0
    %412 = vmatprep.mubr.bf16.mxu0 0
    %413 = vmatmul.mubr.bf16.gmra.mxu0 %v281
    %v414 = vpop.f32.mrf.mxu0
    %v415 = vadd.f32 0.0, %v414
    %v416 = vpop.f32.mrf.mxu0
    %v417 = vpop.f32.mrf.mxu0
    %v418 = vadd.f32 0.0, %v417
    %v419 = vpop.f32.mrf.mxu0
    %420 = vmatprep.mubr.bf16.mxu0 0
    %421 = vmatmul.mubr.bf16.gmra.mxu0 %v284
    %v422 = vpop.f32.mrf.mxu0
    %v423 = vadd.f32 0.0, %v422
    %v424 = vpop.f32.mrf.mxu0
    %v425 = vpop.f32.mrf.mxu0
    %v426 = vadd.f32 0.0, %v425
    %v427 = vpop.f32.mrf.mxu0
    %428 = vmatprep.mubr.bf16.mxu0 0
    %429 = vmatmul.mubr.bf16.gmra.mxu0 %v287
    %v430 = vpop.f32.mrf.mxu0
    %v431 = vadd.f32 0.0, %v430
    %v432 = vpop.f32.mrf.mxu0
    %v433 = vpop.f32.mrf.mxu0
    %v434 = vadd.f32 0.0, %v433
    %v435 = vpop.f32.mrf.mxu0
    %436 = vmatprep.mubr.bf16.mxu0 0
    %437 = vmatmul.mubr.bf16.gmra.mxu0 %v290
    %v438 = vpop.f32.mrf.mxu0
    %v439 = vadd.f32 0.0, %v438
    %v440 = vpop.f32.mrf.mxu0
    %v441 = vpop.f32.mrf.mxu0
    %v442 = vadd.f32 0.0, %v441
    %v443 = vpop.f32.mrf.mxu0
    %444 = vmatprep.mubr.bf16.mxu0 0
    %445 = vmatmul.mubr.bf16.gmra.mxu0 %v293
    %v446 = vpop.f32.mrf.mxu0
    %v447 = vadd.f32 0.0, %v446
    %v448 = vpop.f32.mrf.mxu0
    %v449 = vpop.f32.mrf.mxu0
    %v450 = vadd.f32 0.0, %v449
    %v451 = vpop.f32.mrf.mxu0
    %452 = vmatprep.mubr.bf16.mxu0 0
    %453 = vmatmul.mubr.bf16.gmra.mxu0 %v296
    %v454 = vpop.f32.mrf.mxu0
    %v455 = vadd.f32 0.0, %v454
    %v456 = vpop.f32.mrf.mxu0
    %v457 = vpop.f32.mrf.mxu0
    %v458 = vadd.f32 0.0, %v457
    %v459 = vpop.f32.mrf.mxu0
    %460 = vmatprep.mubr.bf16.mxu0 0
    %461 = vmatmul.mubr.bf16.gmra.mxu0 %v299
    %v462 = vpop.f32.mrf.mxu0
    %v463 = vadd.f32 0.0, %v462
    %v464 = vpop.f32.mrf.mxu0
    %v465 = vpop.f32.mrf.mxu0
    %v466 = vadd.f32 0.0, %v465
    %v467 = vpop.f32.mrf.mxu0
    %468 = vmatprep.mubr.bf16.mxu0 0
    %469 = vmatmul.mubr.bf16.gmra.mxu0 %v302
    %v470 = vpop.f32.mrf.mxu0
    %v471 = vadd.f32 0.0, %v470
    %v472 = vpop.f32.mrf.mxu0
    %v473 = vpop.f32.mrf.mxu0
    %v474 = vadd.f32 0.0, %v473
    %v475 = vpop.f32.mrf.mxu0
    %476 = vmatprep.mubr.bf16.mxu0 0
    %477 = vmatmul.mubr.bf16.gmra.mxu0 %v305
    %v478 = vpop.f32.mrf.mxu0
    %v479 = vadd.f32 0.0, %v478
    %v480 = vpop.f32.mrf.mxu0
    %v481 = vpop.f32.mrf.mxu0
    %v482 = vadd.f32 0.0, %v481
    %v483 = vpop.f32.mrf.mxu0
    %484 = vmatprep.mubr.bf16.mxu0 0
    %485 = vmatmul.mubr.bf16.gmra.mxu0 %v308
    %v486 = vpop.f32.mrf.mxu0
    %v487 = vadd.f32 0.0, %v486
    %v488 = vpop.f32.mrf.mxu0
    %v489 = vpop.f32.mrf.mxu0
    %v490 = vadd.f32 0.0, %v489
    %v491 = vpop.f32.mrf.mxu0
    %492 = vmatprep.mubr.bf16.mxu0 0
    %493 = vmatmul.mubr.bf16.gmra.mxu0 %v311
    %v494 = vpop.f32.mrf.mxu0
    %v495 = vadd.f32 0.0, %v494
    %v496 = vpop.f32.mrf.mxu0
    %v497 = vpop.f32.mrf.mxu0
    %v498 = vadd.f32 0.0, %v497
    %v499 = vpop.f32.mrf.mxu0
    %500 = vmatprep.mubr.bf16.mxu0 0
    %501 = vmatmul.mubr.bf16.gmra.mxu0 %v314
    %v502 = vpop.f32.mrf.mxu0
    %v503 = vadd.f32 0.0, %v502
    %v504 = vpop.f32.mrf.mxu0
    %v505 = vpop.f32.mrf.mxu0
    %v506 = vadd.f32 0.0, %v505
    %v507 = vpop.f32.mrf.mxu0
    %508 = vmatprep.mubr.bf16.mxu0 0
    %509 = vmatmul.mubr.bf16.gmra.mxu0 %v317
    %v510 = vpop.f32.mrf.mxu0
    %v511 = vadd.f32 0.0, %v510
    %v512 = vpop.f32.mrf.mxu0
    %v513 = vpop.f32.mrf.mxu0
    %v514 = vadd.f32 0.0, %v513
    %v515 = vpop.f32.mrf.mxu0
    %516 = vmatprep.mubr.bf16.mxu0 0
    %517 = vmatmul.mubr.bf16.gmra.mxu0 %v320
    %v518 = vpop.f32.mrf.mxu0
    %v519 = vadd.f32 0.0, %v518
    %v520 = vpop.f32.mrf.mxu0
    %v521 = vpop.f32.mrf.mxu0
    %v522 = vadd.f32 0.0, %v521
    %v523 = vpop.f32.mrf.mxu0
    %524 = vmatprep.mubr.bf16.mxu0 0
    %525 = vmatmul.mubr.bf16.gmra.mxu0 %v323
    %v526 = vpop.f32.mrf.mxu0
    %v527 = vadd.f32 0.0, %v526
    %v528 = vpop.f32.mrf.mxu0
    %v529 = vpop.f32.mrf.mxu0
    %v530 = vadd.f32 0.0, %v529
    %v531 = vpop.f32.mrf.mxu0
    %532 = vmatprep.mubr.bf16.mxu0 0
    %533 = vmatmul.mubr.bf16.gmra.mxu0 %v326
    %v534 = vpop.f32.mrf.mxu0
    %v535 = vadd.f32 0.0, %v534
    %v536 = vpop.f32.mrf.mxu0
    %v537 = vpop.f32.mrf.mxu0
    %v538 = vadd.f32 0.0, %v537
    %v539 = vpop.f32.mrf.mxu0
    %540 = vmatprep.mubr.bf16.mxu0 0
    %541 = vmatmul.mubr.bf16.gmra.mxu0 %v329
    %v542 = vpop.f32.mrf.mxu0
    %v543 = vadd.f32 0.0, %v542
    %v544 = vpop.f32.mrf.mxu0
    %v545 = vpop.f32.mrf.mxu0
    %v546 = vadd.f32 0.0, %v545
    %v547 = vpop.f32.mrf.mxu0
    %548 = vmatprep.mubr.bf16.mxu0 0
    %549 = vmatmul.mubr.bf16.gmra.mxu0 %v332
    %v550 = vpop.f32.mrf.mxu0
    %v551 = vadd.f32 0.0, %v550
    %v552 = vpop.f32.mrf.mxu0
    %v553 = vpop.f32.mrf.mxu0
    %v554 = vadd.f32 0.0, %v553
    %v555 = vpop.f32.mrf.mxu0
    %556 = vmatprep.mubr.bf16.mxu0 0
    %557 = vmatmul.mubr.bf16.gmra.mxu0 %v335
    %v558 = vpop.f32.mrf.mxu0
    %v559 = vadd.f32 0.0, %v558
    %v560 = vpop.f32.mrf.mxu0
    %v561 = vpop.f32.mrf.mxu0
    %v562 = vadd.f32 0.0, %v561
    %v563 = vpop.f32.mrf.mxu0
    %564 = vmatprep.mubr.bf16.mxu0 0
    %565 = vmatmul.mubr.bf16.gmra.mxu0 %v338
    %v566 = vpop.f32.mrf.mxu0
    %v567 = vadd.f32 0.0, %v566
    %v568 = vpop.f32.mrf.mxu0
    %v569 = vpop.f32.mrf.mxu0
    %v570 = vadd.f32 0.0, %v569
    %v571 = vpop.f32.mrf.mxu0
    %572 = vmatprep.mubr.bf16.mxu0 0
    %573 = vmatmul.mubr.bf16.gmra.mxu0 %v341
    %v574 = vpop.f32.mrf.mxu0
    %v575 = vadd.f32 0.0, %v574
    %v576 = vpop.f32.mrf.mxu0
    %v577 = vpop.f32.mrf.mxu0
    %v578 = vadd.f32 0.0, %v577
    %v579 = vpop.f32.mrf.mxu0
    %580 = vmatprep.mubr.bf16.mxu0 0
    %581 = vmatmul.mubr.bf16.gmra.mxu0 %v344
    %v582 = vpop.f32.mrf.mxu0
    %v583 = vadd.f32 0.0, %v582
    %v584 = vpop.f32.mrf.mxu0
    %v585 = vpop.f32.mrf.mxu0
    %v586 = vadd.f32 0.0, %v585
    %v587 = vpop.f32.mrf.mxu0
    %588 = vmatprep.mubr.bf16.mxu0 0
    %589 = vmatmul.mubr.bf16.gmra.mxu0 %v347
    %v590 = vpop.f32.mrf.mxu0
    %v591 = vadd.f32 0.0, %v590
    %v592 = vpop.f32.mrf.mxu0
    %v593 = vpop.f32.mrf.mxu0
    %v594 = vadd.f32 0.0, %v593
    %v595 = vpop.f32.mrf.mxu0
    %596 = vmatprep.mubr.bf16.mxu0 0
    %597 = vmatmul.mubr.bf16.gmra.mxu0 %v350
    %v598 = vpop.f32.mrf.mxu0
    %v599 = vadd.f32 0.0, %v598
    %v600 = vpop.f32.mrf.mxu0
    %v601 = vpop.f32.mrf.mxu0
    %v602 = vadd.f32 0.0, %v601
    %v603 = vpop.f32.mrf.mxu0
    %604 = vmatprep.mubr.bf16.mxu0 0
    %605 = vmatmul.mubr.bf16.gmra.mxu0 %v353
    %v606 = vpop.f32.mrf.mxu0
    %v607 = vadd.f32 0.0, %v606
    %v608 = vpop.f32.mrf.mxu0
    %v609 = vpop.f32.mrf.mxu0
    %v610 = vadd.f32 0.0, %v609
    %v611 = vpop.f32.mrf.mxu0
    %612 = vmatprep.mubr.bf16.mxu0 0
    %613 = vmatmul.mubr.bf16.gmra.mxu0 %v356
    %v614 = vpop.f32.mrf.mxu0
    %v615 = vadd.f32 0.0, %v614
    %v616 = vpop.f32.mrf.mxu0
    %v617 = vpop.f32.mrf.mxu0
    %v618 = vadd.f32 0.0, %v617
    %v619 = vpop.f32.mrf.mxu0
    %620 = vmatprep.mubr.bf16.mxu0 0
    %621 = vmatmul.mubr.bf16.gmra.mxu0 %v359
    %v622 = vpop.f32.mrf.mxu0
    %v623 = vadd.f32 0.0, %v622
    %v624 = vpop.f32.mrf.mxu0
    %v625 = vpop.f32.mrf.mxu0
    %v626 = vadd.f32 0.0, %v625
    %v627 = vpop.f32.mrf.mxu0
    %628 = vmatprep.mubr.bf16.mxu0 0
    %629 = vmatmul.mubr.bf16.gmra.mxu0 %v362
    %v630 = vpop.f32.mrf.mxu0
    %v631 = vadd.f32 0.0, %v630
    %v632 = vpop.f32.mrf.mxu0
    %v633 = vpop.f32.mrf.mxu0
    %v634 = vadd.f32 0.0, %v633
    %v635 = vpop.f32.mrf.mxu0
    %636 = vmatprep.mubr.bf16.mxu0 0
    %637 = vmatmul.mubr.bf16.gmra.mxu0 %v365
    %v638 = vpop.f32.mrf.mxu0
    %v639 = vadd.f32 0.0, %v638
    %v640 = vpop.f32.mrf.mxu0
    %v641 = vpop.f32.mrf.mxu0
    %v642 = vadd.f32 0.0, %v641
    %v643 = vpop.f32.mrf.mxu0
    %644 = vmatprep.mubr.bf16.mxu0 0
    %645 = vmatmul.mubr.bf16.gmra.mxu0 %v368
    %v646 = vpop.f32.mrf.mxu0
    %v647 = vadd.f32 0.0, %v646
    %v648 = vpop.f32.mrf.mxu0
    %v649 = vpop.f32.mrf.mxu0
    %v650 = vadd.f32 0.0, %v649
    %v651 = vpop.f32.mrf.mxu0
    %652 = vmatprep.mubr.bf16.mxu0 0
    %653 = vmatmul.mubr.bf16.gmra.mxu0 %v371
    %v654 = vpop.f32.mrf.mxu0
    %v655 = vadd.f32 0.0, %v654
    %v656 = vpop.f32.mrf.mxu0
    %v657 = vpop.f32.mrf.mxu0
    %v658 = vadd.f32 0.0, %v657
    %v659 = vpop.f32.mrf.mxu0
    %660 = vmatprep.mubr.bf16.mxu0 0
    %661 = vmatmul.mubr.bf16.gmra.mxu0 %v374
    %v662 = vpop.f32.mrf.mxu0
    %v663 = vadd.f32 0.0, %v662
    %v664 = vpop.f32.mrf.mxu0
    %v665 = vpop.f32.mrf.mxu0
    %v666 = vadd.f32 0.0, %v665
    %v667 = vpop.f32.mrf.mxu0
    %668 = vdwg.mxu0
    %v669 = vadd.f32 %v415, %v418
    %v670 = vadd.f32 %v669, %v423
    %v671 = vadd.f32 %v670, %v426
    %v672 = vadd.f32 %v671, %v431
    %v673 = vadd.f32 %v672, %v434
    %v674 = vadd.f32 %v673, %v439
    %v675 = vadd.f32 %v674, %v442
    %v676 = vadd.f32 %v675, %v447
    %v677 = vadd.f32 %v676, %v450
    %v678 = vadd.f32 %v677, %v455
    %v679 = vadd.f32 %v678, %v458
    %v680 = vadd.f32 %v679, %v463
    %v681 = vadd.f32 %v680, %v466
    %v682 = vadd.f32 %v681, %v471
    %v683 = vadd.f32 %v682, %v474
    %v684 = vadd.f32 %v683, %v479
    %v685 = vadd.f32 %v684, %v482
    %v686 = vadd.f32 %v685, %v487
    %v687 = vadd.f32 %v686, %v490
    %v688 = vadd.f32 %v687, %v495
    %v689 = vadd.f32 %v688, %v498
    %v690 = vadd.f32 %v689, %v503
    %v691 = vadd.f32 %v690, %v506
    %v692 = vadd.f32 %v691, %v511
    %v693 = vadd.f32 %v692, %v514
    %v694 = vadd.f32 %v693, %v519
    %v695 = vadd.f32 %v694, %v522
    %v696 = vadd.f32 %v695, %v527
    %v697 = vadd.f32 %v696, %v530
    %v698 = vadd.f32 %v697, %v535
    %v699 = vadd.f32 %v698, %v538
    %v700 = vadd.f32 %v699, %v543
    %v701 = vadd.f32 %v700, %v546
    %v702 = vadd.f32 %v701, %v551
    %v703 = vadd.f32 %v702, %v554
    %v704 = vadd.f32 %v703, %v559
    %v705 = vadd.f32 %v704, %v562
    %v706 = vadd.f32 %v705, %v567
    %v707 = vadd.f32 %v706, %v570
    %v708 = vadd.f32 %v707, %v575
    %v709 = vadd.f32 %v708, %v578
    %v710 = vadd.f32 %v709, %v583
    %v711 = vadd.f32 %v710, %v586
    %v712 = vadd.f32 %v711, %v591
    %v713 = vadd.f32 %v712, %v594
    %v714 = vadd.f32 %v713, %v599
    %v715 = vadd.f32 %v714, %v602
    %v716 = vadd.f32 %v715, %v607
    %v717 = vadd.f32 %v716, %v610
    %v718 = vadd.f32 %v717, %v615
    %v719 = vadd.f32 %v718, %v618
    %v720 = vadd.f32 %v719, %v623
    %v721 = vadd.f32 %v720, %v626
    %v722 = vadd.f32 %v721, %v631
    %v723 = vadd.f32 %v722, %v634
    %v724 = vadd.f32 %v723, %v639
    %v725 = vadd.f32 %v724, %v642
    %v726 = vadd.f32 %v725, %v647
    %v727 = vadd.f32 %v726, %v650
    %v728 = vadd.f32 %v727, %v655
    %v729 = vadd.f32 %v728, %v658
    %v730 = vadd.f32 %v729, %v663
    %v731 = vadd.f32 %v730, %v666
    %v732 = vrot.slane %v731, 4
    %v733 = vadd.f32 %v731, %v732
    %v734 = vrot.slane %v733, 2
    %v735 = vadd.f32 %v733, %v734
    %v736 = vrot.slane %v735, 1
    %v737 = vadd.f32 %v735, %v736
    %v738 = vmul.f32 %v415, %v415
    %v739 = vmul.f32 %v418, %v418
    %v740 = vmul.f32 %v423, %v423
    %v741 = vmul.f32 %v426, %v426
    %v742 = vmul.f32 %v431, %v431
    %v743 = vmul.f32 %v434, %v434
    %v744 = vmul.f32 %v439, %v439
    %v745 = vmul.f32 %v442, %v442
    %v746 = vmul.f32 %v447, %v447
    %v747 = vmul.f32 %v450, %v450
    %v748 = vmul.f32 %v455, %v455
    %v749 = vmul.f32 %v458, %v458
    %v750 = vmul.f32 %v463, %v463
    %v751 = vmul.f32 %v466, %v466
    %v752 = vmul.f32 %v471, %v471
    %v753 = vmul.f32 %v474, %v474
    %v754 = vmul.f32 %v479, %v479
    %v755 = vmul.f32 %v482, %v482
    %v756 = vmul.f32 %v487, %v487
    %v757 = vmul.f32 %v490, %v490
    %v758 = vmul.f32 %v495, %v495
    %v759 = vmul.f32 %v498, %v498
    %v760 = vmul.f32 %v503, %v503
    %v761 = vmul.f32 %v506, %v506
    %v762 = vmul.f32 %v511, %v511
    %v763 = vmul.f32 %v514, %v514
    %v764 = vmul.f32 %v519, %v519
    %v765 = vmul.f32 %v522, %v522
    %v766 = vmul.f32 %v527, %v527
    %v767 = vmul.f32 %v530, %v530
    %v768 = vmul.f32 %v535, %v535
    %v769 = vmul.f32 %v538, %v538
    %v770 = vmul.f32 %v543, %v543
    %v771 = vmul.f32 %v546, %v546
    %v772 = vmul.f32 %v551, %v551
    %v773 = vmul.f32 %v554, %v554
    %v774 = vmul.f32 %v559, %v559
    %v775 = vmul.f32 %v562, %v562
    %v776 = vmul.f32 %v567, %v567
    %v777 = vmul.f32 %v570, %v570
    %v778 = vmul.f32 %v575, %v575
    %v779 = vmul.f32 %v578, %v578
    %v780 = vmul.f32 %v583, %v583
    %v781 = vmul.f32 %v586, %v586
    %v782 = vmul.f32 %v591, %v591
    %v783 = vmul.f32 %v594, %v594
    %v784 = vmul.f32 %v599, %v599
    %v785 = vmul.f32 %v602, %v602
    %v786 = vmul.f32 %v607, %v607
    %v787 = vmul.f32 %v610, %v610
    %v788 = vmul.f32 %v615, %v615
    %v789 = vmul.f32 %v618, %v618
    %v790 = vmul.f32 %v623, %v623
    %v791 = vmul.f32 %v626, %v626
    %v792 = vmul.f32 %v631, %v631
    %v793 = vmul.f32 %v634, %v634
    %v794 = vmul.f32 %v639, %v639
    %v795 = vmul.f32 %v642, %v642
    %v796 = vmul.f32 %v647, %v647
    %v797 = vmul.f32 %v650, %v650
    %v798 = vmul.f32 %v655, %v655
    %v799 = vmul.f32 %v658, %v658
    %v800 = vmul.f32 %v663, %v663
    %v801 = vmul.f32 %v666, %v666
    %v802 = vadd.f32 %v738, %v739
    %v803 = vadd.f32 %v802, %v740
    %v804 = vadd.f32 %v803, %v741
    %v805 = vadd.f32 %v804, %v742
    %v806 = vadd.f32 %v805, %v743
    %v807 = vadd.f32 %v806, %v744
    %v808 = vadd.f32 %v807, %v745
    %v809 = vadd.f32 %v808, %v746
    %v810 = vadd.f32 %v809, %v747
    %v811 = vadd.f32 %v810, %v748
    %v812 = vadd.f32 %v811, %v749
    %v813 = vadd.f32 %v812, %v750
    %v814 = vadd.f32 %v813, %v751
    %v815 = vadd.f32 %v814, %v752
    %v816 = vadd.f32 %v815, %v753
    %v817 = vadd.f32 %v816, %v754
    %v818 = vadd.f32 %v817, %v755
    %v819 = vadd.f32 %v818, %v756
    %v820 = vadd.f32 %v819, %v757
    %v821 = vadd.f32 %v820, %v758
    %v822 = vadd.f32 %v821, %v759
    %v823 = vadd.f32 %v822, %v760
    %v824 = vadd.f32 %v823, %v761
    %v825 = vadd.f32 %v824, %v762
    %v826 = vadd.f32 %v825, %v763
    %v827 = vadd.f32 %v826, %v764
    %v828 = vadd.f32 %v827, %v765
    %v829 = vadd.f32 %v828, %v766
    %v830 = vadd.f32 %v829, %v767
    %v831 = vadd.f32 %v830, %v768
    %v832 = vadd.f32 %v831, %v769
    %v833 = vadd.f32 %v832, %v770
    %v834 = vadd.f32 %v833, %v771
    %v835 = vadd.f32 %v834, %v772
    %v836 = vadd.f32 %v835, %v773
    %v837 = vadd.f32 %v836, %v774
    %v838 = vadd.f32 %v837, %v775
    %v839 = vadd.f32 %v838, %v776
    %v840 = vadd.f32 %v839, %v777
    %v841 = vadd.f32 %v840, %v778
    %v842 = vadd.f32 %v841, %v779
    %v843 = vadd.f32 %v842, %v780
    %v844 = vadd.f32 %v843, %v781
    %v845 = vadd.f32 %v844, %v782
    %v846 = vadd.f32 %v845, %v783
    %v847 = vadd.f32 %v846, %v784
    %v848 = vadd.f32 %v847, %v785
    %v849 = vadd.f32 %v848, %v786
    %v850 = vadd.f32 %v849, %v787
    %v851 = vadd.f32 %v850, %v788
    %v852 = vadd.f32 %v851, %v789
    %v853 = vadd.f32 %v852, %v790
    %v854 = vadd.f32 %v853, %v791
    %v855 = vadd.f32 %v854, %v792
    %v856 = vadd.f32 %v855, %v793
    %v857 = vadd.f32 %v856, %v794
    %v858 = vadd.f32 %v857, %v795
    %v859 = vadd.f32 %v858, %v796
    %v860 = vadd.f32 %v859, %v797
    %v861 = vadd.f32 %v860, %v798
    %v862 = vadd.f32 %v861, %v799
    %v863 = vadd.f32 %v862, %v800
    %v864 = vadd.f32 %v863, %v801
    %v865 = vrot.slane %v864, 4
    %v866 = vadd.f32 %v864, %v865
    %v867 = vrot.slane %v866, 2
    %v868 = vadd.f32 %v866, %v867
    %v869 = vrot.slane %v868, 1
    %v870 = vadd.f32 %v868, %v869
    %v871 = vmul.f32 %v737, 0.001953125
    %v872 = vmul.f32 %v870, 0.001953125
    %v873 = vmul.f32 %v871, %v871
    %v874 = vsub.f32 %v872, %v873
    %v875 = vmax.f32 %v874, 0.0
    %v876 = vld [vmem:[%s2] sm:$0x1]
    %v877 = vadd.f32 %v875, 1e-05
    %v878 = vrsqrt.pop %v877
    %v879 = vmul.f32 %v876, %v878
    %v880 = vld [vmem:[%s3] sm:$0x1]
    %v881 = vmul.f32 %v871, %v879
    %v882 = vsub.f32 %v880, %v881
    %v884 = vlaneseq
    %v885 = vshrl.u32 %v884, 7
    %v886 = vsub.s32 0, %v885
    %v887 = vrot.slane %v879, %v886
    %v889 = vmul.f32 %v415, %v887
    %v890 = vmul.f32 %v418, %v887
    %v891 = vmul.f32 %v423, %v887
    %v892 = vmul.f32 %v426, %v887
    %v893 = vmul.f32 %v431, %v887
    %v894 = vmul.f32 %v434, %v887
    %v895 = vmul.f32 %v439, %v887
    %v896 = vmul.f32 %v442, %v887
    %v897 = vmul.f32 %v447, %v887
    %v898 = vmul.f32 %v450, %v887
    %v899 = vmul.f32 %v455, %v887
    %v900 = vmul.f32 %v458, %v887
    %v901 = vmul.f32 %v463, %v887
    %v902 = vmul.f32 %v466, %v887
    %v903 = vmul.f32 %v471, %v887
    %v904 = vmul.f32 %v474, %v887
    %v905 = vmul.f32 %v479, %v887
    %v906 = vmul.f32 %v482, %v887
    %v907 = vmul.f32 %v487, %v887
    %v908 = vmul.f32 %v490, %v887
    %v909 = vmul.f32 %v495, %v887
    %v910 = vmul.f32 %v498, %v887
    %v911 = vmul.f32 %v503, %v887
    %v912 = vmul.f32 %v506, %v887
    %v913 = vmul.f32 %v511, %v887
    %v914 = vmul.f32 %v514, %v887
    %v915 = vmul.f32 %v519, %v887
    %v916 = vmul.f32 %v522, %v887
    %v917 = vmul.f32 %v527, %v887
    %v918 = vmul.f32 %v530, %v887
    %v919 = vmul.f32 %v535, %v887
    %v920 = vmul.f32 %v538, %v887
    %v921 = vmul.f32 %v543, %v887
    %v922 = vmul.f32 %v546, %v887
    %v923 = vmul.f32 %v551, %v887
    %v924 = vmul.f32 %v554, %v887
    %v925 = vmul.f32 %v559, %v887
    %v926 = vmul.f32 %v562, %v887
    %v927 = vmul.f32 %v567, %v887
    %v928 = vmul.f32 %v570, %v887
    %v929 = vmul.f32 %v575, %v887
    %v930 = vmul.f32 %v578, %v887
    %v931 = vmul.f32 %v583, %v887
    %v932 = vmul.f32 %v586, %v887
    %v933 = vmul.f32 %v591, %v887
    %v934 = vmul.f32 %v594, %v887
    %v935 = vmul.f32 %v599, %v887
    %v936 = vmul.f32 %v602, %v887
    %v937 = vmul.f32 %v607, %v887
    %v938 = vmul.f32 %v610, %v887
    %v939 = vmul.f32 %v615, %v887
    %v940 = vmul.f32 %v618, %v887
    %v941 = vmul.f32 %v623, %v887
    %v942 = vmul.f32 %v626, %v887
    %v943 = vmul.f32 %v631, %v887
    %v944 = vmul.f32 %v634, %v887
    %v945 = vmul.f32 %v639, %v887
    %v946 = vmul.f32 %v642, %v887
    %v947 = vmul.f32 %v647, %v887
    %v948 = vmul.f32 %v650, %v887
    %v949 = vmul.f32 %v655, %v887
    %v950 = vmul.f32 %v658, %v887
    %v951 = vmul.f32 %v663, %v887
    %v952 = vmul.f32 %v666, %v887
    %v954 = vlaneseq
    %v955 = vshrl.u32 %v954, 7
    %v956 = vsub.s32 0, %v955
    %v957 = vrot.slane %v882, %v956
    %v959 = vadd.f32 %v889, %v957
    %v960 = vadd.f32 %v890, %v957
    %v961 = vadd.f32 %v891, %v957
    %v962 = vadd.f32 %v892, %v957
    %v963 = vadd.f32 %v893, %v957
    %v964 = vadd.f32 %v894, %v957
    %v965 = vadd.f32 %v895, %v957
    %v966 = vadd.f32 %v896, %v957
    %v967 = vadd.f32 %v897, %v957
    %v968 = vadd.f32 %v898, %v957
    %v969 = vadd.f32 %v899, %v957
    %v970 = vadd.f32 %v900, %v957
    %v971 = vadd.f32 %v901, %v957
    %v972 = vadd.f32 %v902, %v957
    %v973 = vadd.f32 %v903, %v957
    %v974 = vadd.f32 %v904, %v957
    %v975 = vadd.f32 %v905, %v957
    %v976 = vadd.f32 %v906, %v957
    %v977 = vadd.f32 %v907, %v957
    %v978 = vadd.f32 %v908, %v957
    %v979 = vadd.f32 %v909, %v957
    %v980 = vadd.f32 %v910, %v957
    %v981 = vadd.f32 %v911, %v957
    %v982 = vadd.f32 %v912, %v957
    %v983 = vadd.f32 %v913, %v957
    %v984 = vadd.f32 %v914, %v957
    %v985 = vadd.f32 %v915, %v957
    %v986 = vadd.f32 %v916, %v957
    %v987 = vadd.f32 %v917, %v957
    %v988 = vadd.f32 %v918, %v957
    %v989 = vadd.f32 %v919, %v957
    %v990 = vadd.f32 %v920, %v957
    %v991 = vadd.f32 %v921, %v957
    %v992 = vadd.f32 %v922, %v957
    %v993 = vadd.f32 %v923, %v957
    %v994 = vadd.f32 %v924, %v957
    %v995 = vadd.f32 %v925, %v957
    %v996 = vadd.f32 %v926, %v957
    %v997 = vadd.f32 %v927, %v957
    %v998 = vadd.f32 %v928, %v957
    %v999 = vadd.f32 %v929, %v957
    %v1000 = vadd.f32 %v930, %v957
    %v1001 = vadd.f32 %v931, %v957
    %v1002 = vadd.f32 %v932, %v957
    %v1003 = vadd.f32 %v933, %v957
    %v1004 = vadd.f32 %v934, %v957
    %v1005 = vadd.f32 %v935, %v957
    %v1006 = vadd.f32 %v936, %v957
    %v1007 = vadd.f32 %v937, %v957
    %v1008 = vadd.f32 %v938, %v957
    %v1009 = vadd.f32 %v939, %v957
    %v1010 = vadd.f32 %v940, %v957
    %v1011 = vadd.f32 %v941, %v957
    %v1012 = vadd.f32 %v942, %v957
    %v1013 = vadd.f32 %v943, %v957
    %v1014 = vadd.f32 %v944, %v957
    %v1015 = vadd.f32 %v945, %v957
    %v1016 = vadd.f32 %v946, %v957
    %v1017 = vadd.f32 %v947, %v957
    %v1018 = vadd.f32 %v948, %v957
    %v1019 = vadd.f32 %v949, %v957
    %v1020 = vadd.f32 %v950, %v957
    %v1021 = vadd.f32 %v951, %v957
    %v1022 = vadd.f32 %v952, %v957
    %v1023 = vmax.f32 %v959, 0.0
    %v1024 = vmax.f32 %v960, 0.0
    %v1025 = vmax.f32 %v961, 0.0
    %v1026 = vmax.f32 %v962, 0.0
    %v1027 = vmax.f32 %v963, 0.0
    %v1028 = vmax.f32 %v964, 0.0
    %v1029 = vmax.f32 %v965, 0.0
    %v1030 = vmax.f32 %v966, 0.0
    %v1031 = vmax.f32 %v967, 0.0
    %v1032 = vmax.f32 %v968, 0.0
    %v1033 = vmax.f32 %v969, 0.0
    %v1034 = vmax.f32 %v970, 0.0
    %v1035 = vmax.f32 %v971, 0.0
    %v1036 = vmax.f32 %v972, 0.0
    %v1037 = vmax.f32 %v973, 0.0
    %v1038 = vmax.f32 %v974, 0.0
    %v1039 = vmax.f32 %v975, 0.0
    %v1040 = vmax.f32 %v976, 0.0
    %v1041 = vmax.f32 %v977, 0.0
    %v1042 = vmax.f32 %v978, 0.0
    %v1043 = vmax.f32 %v979, 0.0
    %v1044 = vmax.f32 %v980, 0.0
    %v1045 = vmax.f32 %v981, 0.0
    %v1046 = vmax.f32 %v982, 0.0
    %v1047 = vmax.f32 %v983, 0.0
    %v1048 = vmax.f32 %v984, 0.0
    %v1049 = vmax.f32 %v985, 0.0
    %v1050 = vmax.f32 %v986, 0.0
    %v1051 = vmax.f32 %v987, 0.0
    %v1052 = vmax.f32 %v988, 0.0
    %v1053 = vmax.f32 %v989, 0.0
    %v1054 = vmax.f32 %v990, 0.0
    %v1055 = vmax.f32 %v991, 0.0
    %v1056 = vmax.f32 %v992, 0.0
    %v1057 = vmax.f32 %v993, 0.0
    %v1058 = vmax.f32 %v994, 0.0
    %v1059 = vmax.f32 %v995, 0.0
    %v1060 = vmax.f32 %v996, 0.0
    %v1061 = vmax.f32 %v997, 0.0
    %v1062 = vmax.f32 %v998, 0.0
    %v1063 = vmax.f32 %v999, 0.0
    %v1064 = vmax.f32 %v1000, 0.0
    %v1065 = vmax.f32 %v1001, 0.0
    %v1066 = vmax.f32 %v1002, 0.0
    %v1067 = vmax.f32 %v1003, 0.0
    %v1068 = vmax.f32 %v1004, 0.0
    %v1069 = vmax.f32 %v1005, 0.0
    %v1070 = vmax.f32 %v1006, 0.0
    %v1071 = vmax.f32 %v1007, 0.0
    %v1072 = vmax.f32 %v1008, 0.0
    %v1073 = vmax.f32 %v1009, 0.0
    %v1074 = vmax.f32 %v1010, 0.0
    %v1075 = vmax.f32 %v1011, 0.0
    %v1076 = vmax.f32 %v1012, 0.0
    %v1077 = vmax.f32 %v1013, 0.0
    %v1078 = vmax.f32 %v1014, 0.0
    %v1079 = vmax.f32 %v1015, 0.0
    %v1080 = vmax.f32 %v1016, 0.0
    %v1081 = vmax.f32 %v1017, 0.0
    %v1082 = vmax.f32 %v1018, 0.0
    %v1083 = vmax.f32 %v1019, 0.0
    %v1084 = vmax.f32 %v1020, 0.0
    %v1085 = vmax.f32 %v1021, 0.0
    %v1086 = vmax.f32 %v1022, 0.0
    %v1087 = vpack.c.bf16 %v1024, %v1023
    %v1088 = vpack.c.bf16 %v1026, %v1025
    %v1089 = vpack.c.bf16 %v1028, %v1027
    %v1090 = vpack.c.bf16 %v1030, %v1029
    %v1091 = vpack.c.bf16 %v1032, %v1031
    %v1092 = vpack.c.bf16 %v1034, %v1033
    %v1093 = vpack.c.bf16 %v1036, %v1035
    %v1094 = vpack.c.bf16 %v1038, %v1037
    %v1095 = vpack.c.bf16 %v1040, %v1039
    %v1096 = vpack.c.bf16 %v1042, %v1041
    %v1097 = vpack.c.bf16 %v1044, %v1043
    %v1098 = vpack.c.bf16 %v1046, %v1045
    %v1099 = vpack.c.bf16 %v1048, %v1047
    %v1100 = vpack.c.bf16 %v1050, %v1049
    %v1101 = vpack.c.bf16 %v1052, %v1051
    %v1102 = vpack.c.bf16 %v1054, %v1053
    %v1103 = vpack.c.bf16 %v1056, %v1055
    %v1104 = vpack.c.bf16 %v1058, %v1057
    %v1105 = vpack.c.bf16 %v1060, %v1059
    %v1106 = vpack.c.bf16 %v1062, %v1061
    %v1107 = vpack.c.bf16 %v1064, %v1063
    %v1108 = vpack.c.bf16 %v1066, %v1065
    %v1109 = vpack.c.bf16 %v1068, %v1067
    %v1110 = vpack.c.bf16 %v1070, %v1069
    %v1111 = vpack.c.bf16 %v1072, %v1071
    %v1112 = vpack.c.bf16 %v1074, %v1073
    %v1113 = vpack.c.bf16 %v1076, %v1075
    %v1114 = vpack.c.bf16 %v1078, %v1077
    %v1115 = vpack.c.bf16 %v1080, %v1079
    %v1116 = vpack.c.bf16 %v1082, %v1081
    %v1117 = vpack.c.bf16 %v1084, %v1083
    %v1118 = vpack.c.bf16 %v1086, %v1085
    %v1151 = vunpack.c.l.b16 %v1087
    %v1152 = vunpack.c.h.b16 %v1087
    %v1153 = vunpack.c.l.b16 %v1088
    %v1154 = vunpack.c.h.b16 %v1088
    %v1155 = vunpack.c.l.b16 %v1089
    %v1156 = vunpack.c.h.b16 %v1089
    %v1157 = vunpack.c.l.b16 %v1090
    %v1158 = vunpack.c.h.b16 %v1090
    %v1159 = vunpack.c.l.b16 %v1091
    %v1160 = vunpack.c.h.b16 %v1091
    %v1161 = vunpack.c.l.b16 %v1092
    %v1162 = vunpack.c.h.b16 %v1092
    %v1163 = vunpack.c.l.b16 %v1093
    %v1164 = vunpack.c.h.b16 %v1093
    %v1165 = vunpack.c.l.b16 %v1094
    %v1166 = vunpack.c.h.b16 %v1094
    %v1167 = vunpack.c.l.b16 %v1095
    %v1168 = vunpack.c.h.b16 %v1095
    %v1169 = vunpack.c.l.b16 %v1096
    %v1170 = vunpack.c.h.b16 %v1096
    %v1171 = vunpack.c.l.b16 %v1097
    %v1172 = vunpack.c.h.b16 %v1097
    %v1173 = vunpack.c.l.b16 %v1098
    %v1174 = vunpack.c.h.b16 %v1098
    %v1175 = vunpack.c.l.b16 %v1099
    %v1176 = vunpack.c.h.b16 %v1099
    %v1177 = vunpack.c.l.b16 %v1100
    %v1178 = vunpack.c.h.b16 %v1100
    %v1179 = vunpack.c.l.b16 %v1101
    %v1180 = vunpack.c.h.b16 %v1101
    %v1181 = vunpack.c.l.b16 %v1102
    %v1182 = vunpack.c.h.b16 %v1102
    %v1183 = vunpack.c.l.b16 %v1103
    %v1184 = vunpack.c.h.b16 %v1103
    %v1185 = vunpack.c.l.b16 %v1104
    %v1186 = vunpack.c.h.b16 %v1104
    %v1187 = vunpack.c.l.b16 %v1105
    %v1188 = vunpack.c.h.b16 %v1105
    %v1189 = vunpack.c.l.b16 %v1106
    %v1190 = vunpack.c.h.b16 %v1106
    %v1191 = vunpack.c.l.b16 %v1107
    %v1192 = vunpack.c.h.b16 %v1107
    %v1193 = vunpack.c.l.b16 %v1108
    %v1194 = vunpack.c.h.b16 %v1108
    %v1195 = vunpack.c.l.b16 %v1109
    %v1196 = vunpack.c.h.b16 %v1109
    %v1197 = vunpack.c.l.b16 %v1110
    %v1198 = vunpack.c.h.b16 %v1110
    %v1199 = vunpack.c.l.b16 %v1111
    %v1200 = vunpack.c.h.b16 %v1111
    %v1201 = vunpack.c.l.b16 %v1112
    %v1202 = vunpack.c.h.b16 %v1112
    %v1203 = vunpack.c.l.b16 %v1113
    %v1204 = vunpack.c.h.b16 %v1113
    %v1205 = vunpack.c.l.b16 %v1114
    %v1206 = vunpack.c.h.b16 %v1114
    %v1207 = vunpack.c.l.b16 %v1115
    %v1208 = vunpack.c.h.b16 %v1115
    %v1209 = vunpack.c.l.b16 %v1116
    %v1210 = vunpack.c.h.b16 %v1116
    %v1211 = vunpack.c.l.b16 %v1117
    %v1212 = vunpack.c.h.b16 %v1117
    %v1213 = vunpack.c.l.b16 %v1118
    %v1214 = vunpack.c.h.b16 %v1118
    %v1215 = vpack.c.b16 %v1151, %v1151
    %v1216 = vpack.c.b16 %v1152, %v1152
    %v1217 = vpack.c.b16 %v1153, %v1153
    %v1218 = vpack.c.b16 %v1154, %v1154
    %v1219 = vpack.c.b16 %v1155, %v1155
    %v1220 = vpack.c.b16 %v1156, %v1156
    %v1221 = vpack.c.b16 %v1157, %v1157
    %v1222 = vpack.c.b16 %v1158, %v1158
    %v1223 = vpack.c.b16 %v1159, %v1159
    %v1224 = vpack.c.b16 %v1160, %v1160
    %v1225 = vpack.c.b16 %v1161, %v1161
    %v1226 = vpack.c.b16 %v1162, %v1162
    %v1227 = vpack.c.b16 %v1163, %v1163
    %v1228 = vpack.c.b16 %v1164, %v1164
    %v1229 = vpack.c.b16 %v1165, %v1165
    %v1230 = vpack.c.b16 %v1166, %v1166
    %v1231 = vpack.c.b16 %v1167, %v1167
    %v1232 = vpack.c.b16 %v1168, %v1168
    %v1233 = vpack.c.b16 %v1169, %v1169
    %v1234 = vpack.c.b16 %v1170, %v1170
    %v1235 = vpack.c.b16 %v1171, %v1171
    %v1236 = vpack.c.b16 %v1172, %v1172
    %v1237 = vpack.c.b16 %v1173, %v1173
    %v1238 = vpack.c.b16 %v1174, %v1174
    %v1239 = vpack.c.b16 %v1175, %v1175
    %v1240 = vpack.c.b16 %v1176, %v1176
    %v1241 = vpack.c.b16 %v1177, %v1177
    %v1242 = vpack.c.b16 %v1178, %v1178
    %v1243 = vpack.c.b16 %v1179, %v1179
    %v1244 = vpack.c.b16 %v1180, %v1180
    %v1245 = vpack.c.b16 %v1181, %v1181
    %v1246 = vpack.c.b16 %v1182, %v1182
    %v1247 = vpack.c.b16 %v1183, %v1183
    %v1248 = vpack.c.b16 %v1184, %v1184
    %v1249 = vpack.c.b16 %v1185, %v1185
    %v1250 = vpack.c.b16 %v1186, %v1186
    %v1251 = vpack.c.b16 %v1187, %v1187
    %v1252 = vpack.c.b16 %v1188, %v1188
    %v1253 = vpack.c.b16 %v1189, %v1189
    %v1254 = vpack.c.b16 %v1190, %v1190
    %v1255 = vpack.c.b16 %v1191, %v1191
    %v1256 = vpack.c.b16 %v1192, %v1192
    %v1257 = vpack.c.b16 %v1193, %v1193
    %v1258 = vpack.c.b16 %v1194, %v1194
    %v1259 = vpack.c.b16 %v1195, %v1195
    %v1260 = vpack.c.b16 %v1196, %v1196
    %v1261 = vpack.c.b16 %v1197, %v1197
    %v1262 = vpack.c.b16 %v1198, %v1198
    %v1263 = vpack.c.b16 %v1199, %v1199
    %v1264 = vpack.c.b16 %v1200, %v1200
    %v1265 = vpack.c.b16 %v1201, %v1201
    %v1266 = vpack.c.b16 %v1202, %v1202
    %v1267 = vpack.c.b16 %v1203, %v1203
    %v1268 = vpack.c.b16 %v1204, %v1204
    %v1269 = vpack.c.b16 %v1205, %v1205
    %v1270 = vpack.c.b16 %v1206, %v1206
    %v1271 = vpack.c.b16 %v1207, %v1207
    %v1272 = vpack.c.b16 %v1208, %v1208
    %v1273 = vpack.c.b16 %v1209, %v1209
    %v1274 = vpack.c.b16 %v1210, %v1210
    %v1275 = vpack.c.b16 %v1211, %v1211
    %v1276 = vpack.c.b16 %v1212, %v1212
    %v1277 = vpack.c.b16 %v1213, %v1213
    %v1278 = vpack.c.b16 %v1214, %v1214
    %1343 = vst [vmem:[#allocation2] sm:$0xf] %v1215
    %1344 = vst [vmem:[#allocation2 + $0x4] sm:$0xf] %v1216
    %1345 = vst [vmem:[#allocation2 + $0x8] sm:$0xf] %v1217
    %1346 = vst [vmem:[#allocation2 + $0xc] sm:$0xf] %v1218
    %1347 = vst [vmem:[#allocation2 + $0x10] sm:$0xf] %v1219
    %1348 = vst [vmem:[#allocation2 + $0x14] sm:$0xf] %v1220
    %1349 = vst [vmem:[#allocation2 + $0x18] sm:$0xf] %v1221
    %1350 = vst [vmem:[#allocation2 + $0x1c] sm:$0xf] %v1222
    %1351 = vst [vmem:[#allocation2 + $0x20] sm:$0xf] %v1223
    %1352 = vst [vmem:[#allocation2 + $0x24] sm:$0xf] %v1224
    %1353 = vst [vmem:[#allocation2 + $0x28] sm:$0xf] %v1225
    %1354 = vst [vmem:[#allocation2 + $0x2c] sm:$0xf] %v1226
    %1355 = vst [vmem:[#allocation2 + $0x30] sm:$0xf] %v1227
    %1356 = vst [vmem:[#allocation2 + $0x34] sm:$0xf] %v1228
    %1357 = vst [vmem:[#allocation2 + $0x38] sm:$0xf] %v1229
    %1358 = vst [vmem:[#allocation2 + $0x3c] sm:$0xf] %v1230
    %1359 = vst [vmem:[#allocation2 + $0x40] sm:$0xf] %v1231
    %1360 = vst [vmem:[#allocation2 + $0x44] sm:$0xf] %v1232
    %1361 = vst [vmem:[#allocation2 + $0x48] sm:$0xf] %v1233
    %1362 = vst [vmem:[#allocation2 + $0x4c] sm:$0xf] %v1234
    %1363 = vst [vmem:[#allocation2 + $0x50] sm:$0xf] %v1235
    %1364 = vst [vmem:[#allocation2 + $0x54] sm:$0xf] %v1236
    %1365 = vst [vmem:[#allocation2 + $0x58] sm:$0xf] %v1237
    %1366 = vst [vmem:[#allocation2 + $0x5c] sm:$0xf] %v1238
    %1367 = vst [vmem:[#allocation2 + $0x60] sm:$0xf] %v1239
    %1368 = vst [vmem:[#allocation2 + $0x64] sm:$0xf] %v1240
    %1369 = vst [vmem:[#allocation2 + $0x68] sm:$0xf] %v1241
    %1370 = vst [vmem:[#allocation2 + $0x6c] sm:$0xf] %v1242
    %1371 = vst [vmem:[#allocation2 + $0x70] sm:$0xf] %v1243
    %1372 = vst [vmem:[#allocation2 + $0x74] sm:$0xf] %v1244
    %1373 = vst [vmem:[#allocation2 + $0x78] sm:$0xf] %v1245
    %1374 = vst [vmem:[#allocation2 + $0x7c] sm:$0xf] %v1246
    %1375 = vst [vmem:[#allocation2 + $0x80] sm:$0xf] %v1247
    %1376 = vst [vmem:[#allocation2 + $0x84] sm:$0xf] %v1248
    %1377 = vst [vmem:[#allocation2 + $0x88] sm:$0xf] %v1249
    %1378 = vst [vmem:[#allocation2 + $0x8c] sm:$0xf] %v1250
    %1379 = vst [vmem:[#allocation2 + $0x90] sm:$0xf] %v1251
    %1380 = vst [vmem:[#allocation2 + $0x94] sm:$0xf] %v1252
    %1381 = vst [vmem:[#allocation2 + $0x98] sm:$0xf] %v1253
    %1382 = vst [vmem:[#allocation2 + $0x9c] sm:$0xf] %v1254
    %1383 = vst [vmem:[#allocation2 + $0xa0] sm:$0xf] %v1255
    %1384 = vst [vmem:[#allocation2 + $0xa4] sm:$0xf] %v1256
    %1385 = vst [vmem:[#allocation2 + $0xa8] sm:$0xf] %v1257
    %1386 = vst [vmem:[#allocation2 + $0xac] sm:$0xf] %v1258
    %1387 = vst [vmem:[#allocation2 + $0xb0] sm:$0xf] %v1259
    %1388 = vst [vmem:[#allocation2 + $0xb4] sm:$0xf] %v1260
    %1389 = vst [vmem:[#allocation2 + $0xb8] sm:$0xf] %v1261
    %1390 = vst [vmem:[#allocation2 + $0xbc] sm:$0xf] %v1262
    %1391 = vst [vmem:[#allocation2 + $0xc0] sm:$0xf] %v1263
    %1392 = vst [vmem:[#allocation2 + $0xc4] sm:$0xf] %v1264
    %1393 = vst [vmem:[#allocation2 + $0xc8] sm:$0xf] %v1265
    %1394 = vst [vmem:[#allocation2 + $0xcc] sm:$0xf] %v1266
    %1395 = vst [vmem:[#allocation2 + $0xd0] sm:$0xf] %v1267
    %1396 = vst [vmem:[#allocation2 + $0xd4] sm:$0xf] %v1268
    %1397 = vst [vmem:[#allocation2 + $0xd8] sm:$0xf] %v1269
    %1398 = vst [vmem:[#allocation2 + $0xdc] sm:$0xf] %v1270
    %1399 = vst [vmem:[#allocation2 + $0xe0] sm:$0xf] %v1271
    %1400 = vst [vmem:[#allocation2 + $0xe4] sm:$0xf] %v1272
    %1401 = vst [vmem:[#allocation2 + $0xe8] sm:$0xf] %v1273
    %1402 = vst [vmem:[#allocation2 + $0xec] sm:$0xf] %v1274
    %1403 = vst [vmem:[#allocation2 + $0xf0] sm:$0xf] %v1275
    %1404 = vst [vmem:[#allocation2 + $0xf4] sm:$0xf] %v1276
    %1405 = vst [vmem:[#allocation2 + $0xf8] sm:$0xf] %v1277
    %1406 = vst [vmem:[#allocation2 + $0xfc] sm:$0xf] %v1278
    // Predicated region
    $region18: #{tpu_custom_call.1} parent=1 // pred_check
      _
    $region19: #{tpu_custom_call.1} parent=1 // pred_check_branch
      %1408 = sbr.rel (0) target = $region21
    $region20: #{tpu_custom_call.1} parent=1 // pred_region
      %s1410 = ssub.s32 4096, 4096
      %1411 = vsyncadd [#allocation3], %s1410
      %s1412 = sshll.u32 [#allocation2], 4
      %s1413 = int_to_ptr.vmem [resolvable:$true] %s1412
      %1418 = dma.vmem_to_hbm [thread:$0]  %s1413, 4096, %s4, [#allocation3], 64, 64, 4
    $region21: #{tpu_custom_call.1} parent=1 // pred_fallthru
      _
    // Predicated region
    $region22: #{tpu_custom_call.1} parent=1 // pred_check
      _
    $region23: #{tpu_custom_call.1} parent=1 // pred_check_branch
      %1420 = sbr.rel (0) target = $region25
    $region24: #{tpu_custom_call.1} parent=1 // pred_region
      %1421 = dma.done [#allocation3], 4096
    $region25: #{tpu_custom_call.1} parent=1 // pred_fallthru
      _
    %1422 = vsyncpa [#allocation3], 1

</llo_original>
